<compile_context>
chip_gen: v6e
topology: v6e:2x2x1
jax: 0.10.0
libtpu: 0.0.40
codegen_flags: <defaults>
</compile_context>

<pallas_src>
import jax
import jax.numpy as jnp
from jax.experimental import pallas as pl
from jax.experimental.pallas import tpu as pltpu


def _round_up(x, m):
    return ((x + m - 1) // m) * m


def _pad_axis0(x, n):
    if x.shape[0] == n:
        return x
    return jnp.pad(x, [(0, n - x.shape[0])] + [(0, 0)] * (x.ndim - 1))


def _pad_last(x, d):
    if x.shape[-1] == d:
        return x
    return jnp.pad(x, [(0, 0)] * (x.ndim - 1) + [(0, d - x.shape[-1])])


def _full_spec(arr):
    nd = arr.ndim
    return pl.BlockSpec(arr.shape, lambda i, _n=nd: (0,) * _n)


# ----------------------------------------------------------------------------
# Pallas kernel for one GCNLayer (a block of Bb batch items per grid step)
# ----------------------------------------------------------------------------
def make_gcn_layer_kernel(Bb, N, two_h, graph_type, gcn_gate, fuse_residual):
    H = two_h // 2
    rows = Bb * N

    def kernel(*refs):
        pos = 0
        adj_ref = refs[pos]; pos += 1          # (Bb, N, N) bf16
        adjt_ref = refs[pos]; pos += 1         # (Bb, N, N) bf16  (A^T, hoisted)
        a_ref = refs[pos]; pos += 1            # (Bb, N, Dp)
        if fuse_residual:
            b_ref = refs[pos]; pos += 1        # (Bb, N, Dp)
        if graph_type == 'dependent':
            inv_in_ref = refs[pos]; pos += 1   # (Bb, N, 1) f32, 1/(deg_in + 1)
            inv_out_ref = refs[pos]; pos += 1  # (Bb, N, 1) f32, 1/(deg_out + 1)
        w_ref = refs[pos]; pos += 1            # (2*Dp, 2H) bf16 blockdiag(w_in, w_out)
        bias_ref = refs[pos]; pos += 1         # (1, 2H) f32 == [2*b_in | 2*b_out]
        if gcn_gate:
            gw_in_ref = refs[pos]; pos += 1    # (1, Dp) f32
            gw_out_ref = refs[pos]; pos += 1   # (1, Dp) f32
            gb_ref = refs[pos]; pos += 1       # (2,) f32 in SMEM
        gamma_ref = refs[pos]; pos += 1        # (1, 2H) f32
        beta_ref = refs[pos]; pos += 1         # (1, 2H) f32
        if fuse_residual:
            prev_ref = refs[pos]; pos += 1     # (Bb, N, Dp) f32
        out_ref = refs[pos]                    # (Bb, N, 2H)

        Dp = a_ref.shape[-1]

        # Layer input; the residual add of the outer GCN loop is fused here and
        # re-emitted as the new running residual `prev` (one less HBM round trip).
        if fuse_residual:
            x3 = a_ref[...].astype(jnp.float32) + b_ref[...].astype(jnp.float32)
            prev_ref[...] = x3.astype(prev_ref.dtype)
        else:
            x3 = a_ref[...].astype(jnp.float32)
        x3_bf = x3.astype(jnp.bfloat16)

        # ---- batched message passing on the MXU (bf16 in, f32 accumulate) ----
        ax_in = jnp.einsum('bij,bjd->bid', adj_ref[...], x3_bf,
                           preferred_element_type=jnp.float32).reshape(rows, Dp)
        ax_out = jnp.einsum('bij,bjd->bid', adjt_ref[...], x3_bf,
                            preferred_element_type=jnp.float32).reshape(rows, Dp)
        x_flat = x3.reshape(rows, Dp)

        # ---- gating (elementwise, f32) ---------------------------------------
        if gcn_gate:
            g_in = jax.nn.sigmoid(
                jnp.sum(ax_in * gw_in_ref[...], axis=-1, keepdims=True))
            ax_in = ax_in * g_in + gb_ref[0]
            g_out = jax.nn.sigmoid(
                jnp.sum(ax_out * gw_out_ref[...], axis=-1, keepdims=True))
            ax_out = ax_out * g_out + gb_ref[1]

        # ---- fused projections: fc(Ax)+fc(x) == (Ax+x)@W + 2b, both branches
        #      in ONE lane-dense matmul against a block-diagonal weight ---------
        m = jnp.concatenate(
            [(ax_in + x_flat).astype(jnp.bfloat16),
             (ax_out + x_flat).astype(jnp.bfloat16)], axis=-1)     # (rows, 2*Dp)
        axw = (jnp.dot(m, w_ref[...], preferred_element_type=jnp.float32)
               + bias_ref[...])                                     # (rows, 2H)

        if graph_type == 'dependent':
            lane = jax.lax.broadcasted_iota(jnp.int32, (rows, two_h), 1)
            inv = jnp.where(lane < H,
                            inv_in_ref[...].reshape(rows, 1),
                            inv_out_ref[...].reshape(rows, 1))
            axw = axw * inv

        # ---- LayerNorm over the concatenated feature dim (eps = 1e-5) --------
        inv_f = 1.0 / float(two_h)
        mean = jnp.sum(axw, axis=-1, keepdims=True) * inv_f
        cen = axw - mean
        var = jnp.sum(cen * cen, axis=-1, keepdims=True) * inv_f
        normed = cen * jax.lax.rsqrt(var + 1e-5) * gamma_ref[...] + beta_ref[...]

        # TODO(synk): the module's GELU class is undefined in the source; the
        # tanh-approximation GELU is used (PyTorch nn.GELU default is erf).
        k0 = 0.7978845608028654  # sqrt(2/pi)
        y = 0.5 * normed * (1.0 + jnp.tanh(
            k0 * (normed + 0.044715 * normed * normed * normed)))
        out_ref[...] = y.reshape(Bb, N, two_h).astype(out_ref.dtype)

    return kernel


# ----------------------------------------------------------------------------
# Generation-aware block-size / VMEM planning
# ----------------------------------------------------------------------------
def _tpu_memory_plan():
    """(per-step VMEM footprint budget, vmem_limit_bytes or None, target rows)."""
    kind = ""
    try:
        kind = jax.devices()[0].device_kind.lower()
    except Exception:
        pass
    if any(t in kind for t in ("v4", "v5", "v6")):       # 128 MiB physical VMEM
        return 48 * 1024 * 1024, 96 * 1024 * 1024, 2048
    if "7" in kind:                                      # v7x: 64 MiB physical
        return 20 * 1024 * 1024, 48 * 1024 * 1024, 1024
    return 10 * 1024 * 1024, None, 512                   # unknown: stay conservative


def _choose_block_b(B, N, dp, two_h, budget, target_rows):
    """Largest batch block that (a) keeps >=2 grid steps when B>=2 so the
    'parallel' grid axis can feed both v7x TensorCores, and (b) keeps the
    double-buffered footprint + temporaries under the per-chip budget."""
    max_bb = B if B < 2 else max(1, B // 2)
    best = 1
    for bb in range(1, max_bb + 1):
        rows = bb * N
        per_step = (2 * bb * N * N * 2          # adj + adj^T (bf16)
                    + rows * dp * 4             # a input (f32 worst case)
                    + rows * dp * 2             # b input (bf16)
                    + rows * 2 * 4              # inv_in + inv_out
                    + rows * dp * 4             # prev output
                    + rows * two_h * 4)         # mem output (f32 worst case)
        temps = rows * (4 * dp + 4 * two_h) * 4
        if 2 * per_step + temps > budget and bb > 1:
            break
        best = bb
        if rows >= target_rows:
            break
    return best


# ----------------------------------------------------------------------------
# Hoisted (once per model) parameter preparation
# ----------------------------------------------------------------------------
def prepare_gcn_params(layer_params):
    """Zero-pad input dims to a multiple of 128, build block-diagonal bf16
    projection weights, fold the doubled biases -- done once, not per layer call."""
    prepared = []
    for p in layer_params:
        d_in, H = p['w_in'].shape
        dp = _round_up(d_in, 128)
        w_blk = jnp.zeros((2 * dp, 2 * H), jnp.float32)
        w_blk = w_blk.at[:d_in, :H].set(p['w_in'])
        w_blk = w_blk.at[dp:dp + d_in, H:].set(p['w_out'])
        bias2 = jnp.concatenate([2.0 * p['b_in'], 2.0 * p['b_out']], axis=-1)
        gw_in = jnp.zeros((1, dp), jnp.float32).at[:, :d_in].set(p['gate_w_in'])
        gw_out = jnp.zeros((1, dp), jnp.float32).at[:, :d_in].set(p['gate_w_out'])
        gb2 = jnp.concatenate([p['gate_b_in'], p['gate_b_out']]).astype(jnp.float32)
        prepared.append({
            'din_pad': dp,
            'w_blk': w_blk.astype(jnp.bfloat16),
            'bias2': bias2.astype(jnp.float32),
            'gate_w_in': gw_in, 'gate_w_out': gw_out, 'gate_b2': gb2,
            'gamma': p['gamma'].astype(jnp.float32),
            'beta': p['beta'].astype(jnp.float32),
        })
    return prepared


# ----------------------------------------------------------------------------
# Wrapper: one GCNLayer over (Bpad, N, *) inputs
# ----------------------------------------------------------------------------
def gcn_layer_pallas(adj_bf, adjt_bf, a, b, inv_in, inv_out, p,
                     graph_type, gcn_gate, out_dtype, block_b, vmem_limit):
    B, N, _ = adj_bf.shape
    dp = p['din_pad']
    two_h = p['gamma'].shape[-1]
    fuse = b is not None
    Bb = block_b
    n_blocks = B // Bb           # caller already padded B to a multiple of Bb

    a = _pad_last(a, dp)
    if fuse:
        b = _pad_last(b, dp)

    kernel = make_gcn_layer_kernel(Bb, N, two_h, graph_type, gcn_gate, fuse)

    args = [adj_bf, adjt_bf, a]
    in_specs = [pl.BlockSpec((Bb, N, N), lambda i: (i, 0, 0)),
                pl.BlockSpec((Bb, N, N), lambda i: (i, 0, 0)),
                pl.BlockSpec((Bb, N, dp), lambda i: (i, 0, 0))]
    if fuse:
        args.append(b)
        in_specs.append(pl.BlockSpec((Bb, N, dp), lambda i: (i, 0, 0)))
    if graph_type == 'dependent':
        args += [inv_in, inv_out]
        in_specs += [pl.BlockSpec((Bb, N, 1), lambda i: (i, 0, 0)),
                     pl.BlockSpec((Bb, N, 1), lambda i: (i, 0, 0))]
    args += [p['w_blk'], p['bias2']]
    in_specs += [_full_spec(p['w_blk']), _full_spec(p['bias2'])]
    if gcn_gate:
        args += [p['gate_w_in'], p['gate_w_out'], p['gate_b2']]
        in_specs += [_full_spec(p['gate_w_in']), _full_spec(p['gate_w_out']),
                     pl.BlockSpec(memory_space=pltpu.MemorySpace.SMEM)]
    args += [p['gamma'], p['beta']]
    in_specs += [_full_spec(p['gamma']), _full_spec(p['beta'])]

    mem_struct = jax.ShapeDtypeStruct((B, N, two_h), out_dtype)
    mem_spec = pl.BlockSpec((Bb, N, two_h), lambda i: (i, 0, 0))
    if fuse:
        out_shape = (jax.ShapeDtypeStruct((B, N, dp), jnp.float32), mem_struct)
        out_specs = (pl.BlockSpec((Bb, N, dp), lambda i: (i, 0, 0)), mem_spec)
    else:
        out_shape = mem_struct
        out_specs = mem_spec

    cp = dict(dimension_semantics=("parallel",))
    if vmem_limit is not None:
        cp['vmem_limit_bytes'] = vmem_limit

    res = pl.pallas_call(
        kernel,
        out_shape=out_shape,
        grid=(n_blocks,),
        in_specs=in_specs,
        out_specs=out_specs,
        compiler_params=pltpu.CompilerParams(**cp),
    )(*args)
    if fuse:
        return res[0], res[1]
    return res


# ----------------------------------------------------------------------------
# GCN forward (glue in plain JAX, per-layer compute in Pallas)
# ----------------------------------------------------------------------------
def gcn_forward(adj, inputs, prepared_params, graph_type, gcn_gate, residual):
    B, N, _ = inputs.shape
    n_layers = len(prepared_params)
    two_h = prepared_params[0]['gamma'].shape[-1]
    dp0 = prepared_params[0]['din_pad']
    dp_max = max(pp['din_pad'] for pp in prepared_params)

    budget, vmem_limit, target_rows = _tpu_memory_plan()
    Bb = _choose_block_b(B, N, dp_max, two_h, budget, target_rows)
    Bpad = _round_up(B, Bb)          # pad the batch rather than fall back to tiny steps

    # Hoisted, adjacency-invariant prep shared by every layer: bf16 adjacency
    # (and its transpose, transposed ONCE on the host) + exact degree reciprocals.
    adj_p = _pad_axis0(adj.astype(jnp.float32), Bpad)
    adj_bf = adj_p.astype(jnp.bfloat16)                       # 0/1 -> exact in bf16
    adjt_bf = jnp.transpose(adj_p, (0, 2, 1)).astype(jnp.bfloat16)
    inv_in = 1.0 / (jnp.sum(adj_p, axis=2, keepdims=True) + 1.0)   # (Bpad, N, 1)
    inv_out = 1.0 / (jnp.sum(adj_p, axis=1)[..., None] + 1.0)      # (Bpad, N, 1)

    x0 = _pad_last(_pad_axis0(inputs, Bpad), dp0)

    def run_layer(a, b, p, is_last):
        # intermediate memory banks travel in bf16 (halves their HBM traffic);
        # the final layer output stays f32.
        out_dtype = jnp.float32 if is_last else jnp.bfloat16
        return gcn_layer_pallas(adj_bf, adjt_bf, a, b, inv_in, inv_out, p,
                                graph_type, gcn_gate, out_dtype, Bb, vmem_limit)

    if not residual:
        x = x0
        for i, p in enumerate(prepared_params):
            x = run_layer(x, None, p, i == n_layers - 1)
        return x[:B].astype(jnp.float32)

    mem = run_layer(x0, None, prepared_params[0], n_layers == 1)
    prev = mem   # eval-mode dropout == identity, so torch's `inputs` after layer 0 is mem
    for i, p in enumerate(prepared_params[1:], start=1):
        # kernel computes layer_input = prev + mem and re-emits it as the new `prev`
        prev, mem = run_layer(prev, mem, p, i == n_layers - 1)
    return mem[:B].astype(jnp.float32)


# ----------------------------------------------------------------------------
# Pure-JAX reference (mirrors the module's algebra and the kernel's numeric
# contract: bf16 MXU operands with f32 accumulation, bf16 intermediate mems)
# ----------------------------------------------------------------------------
def gcn_layer_ref(adj, x, p, graph_type, gcn_gate):
    f32, bf16 = jnp.float32, jnp.bfloat16
    adj_b = adj.astype(bf16)     # 0/1 entries -> exact
    x_b = x.astype(bf16)
    denom_in = jnp.sum(adj, axis=2, keepdims=True) + 1.0
    denom_out = jnp.sum(adj, axis=1)[:, :, None] + 1.0
    ax_in = jnp.einsum('bij,bjd->bid', adj_b, x_b, preferred_element_type=f32)
    ax_out = jnp.einsum('bji,bjd->bid', adj_b, x_b, preferred_element_type=f32)
    if gcn_gate:
        g_in = jax.nn.sigmoid(jnp.sum(ax_in * p['gate_w_in'], -1, keepdims=True))
        ax_in = ax_in * g_in + p['gate_b_in']
        g_out = jax.nn.sigmoid(jnp.sum(ax_out * p['gate_w_out'], -1, keepdims=True))
        ax_out = ax_out * g_out + p['gate_b_out']
    m_in = (ax_in + x).astype(bf16)
    m_out = (ax_out + x).astype(bf16)
    # fc(Ax) + fc(x) == (Ax + x) @ W + 2*b   (bias applied twice, as in torch)
    axw_in = jnp.einsum('bnd,dh->bnh', m_in, p['w_in'].astype(bf16),
                        preferred_element_type=f32) + 2.0 * p['b_in']
    axw_out = jnp.einsum('bnd,dh->bnh', m_out, p['w_out'].astype(bf16),
                         preferred_element_type=f32) + 2.0 * p['b_out']
    if graph_type == 'dependent':
        axw_in = axw_in / denom_in
        axw_out = axw_out / denom_out
    axw = jnp.concatenate([axw_in, axw_out], axis=-1)
    mean = jnp.mean(axw, -1, keepdims=True)
    var = jnp.mean(jnp.square(axw - mean), -1, keepdims=True)
    normed = (axw - mean) * jax.lax.rsqrt(var + 1e-5) * p['gamma'] + p['beta']
    c = 0.7978845608028654
    return 0.5 * normed * (1.0 + jnp.tanh(c * (normed + 0.044715 * normed ** 3)))


def gcn_forward_ref(adj, inputs, layer_params, graph_type, gcn_gate, residual):
    n = len(layer_params)

    def _round(m, i):   # intermediate memory banks travel in bf16, like the kernel
        return m.astype(jnp.bfloat16).astype(jnp.float32) if i < n - 1 else m

    if not residual:
        x = inputs
        for i, p in enumerate(layer_params):
            x = _round(gcn_layer_ref(adj, x, p, graph_type, gcn_gate), i)
        return x

    mem = _round(gcn_layer_ref(adj, inputs, layer_params[0], graph_type, gcn_gate), 0)
    prev = mem   # eval-mode dropout == identity
    for i, p in enumerate(layer_params[1:], start=1):
        x_in = prev + mem
        mem = _round(gcn_layer_ref(adj, x_in, p, graph_type, gcn_gate), i)
        prev = x_in
    return mem


# ----------------------------------------------------------------------------
# Deterministic parameter init (shapes per GCNLayer.__init__)
# ----------------------------------------------------------------------------
def init_gcn_params(key, in_dim, hidden_dim, n_layers):
    layers = []
    for l in range(n_layers):
        d_in = in_dim if l == 0 else hidden_dim * 2
        key, k0, k1, k2, k3, k4, k5, k6, k7, k8, k9 = jax.random.split(key, 11)
        scale = 1.0 / jnp.sqrt(jnp.float32(d_in))
        xavier = jnp.sqrt(2.0 / (d_in + 1.0))
        layers.append({
            'w_in':  (jax.random.normal(k0, (d_in, hidden_dim)) * scale).astype(jnp.float32),
            'b_in':  (jax.random.normal(k1, (1, hidden_dim)) * 0.01).astype(jnp.float32),
            'w_out': (jax.random.normal(k2, (d_in, hidden_dim)) * scale).astype(jnp.float32),
            'b_out': (jax.random.normal(k3, (1, hidden_dim)) * 0.01).astype(jnp.float32),
            # gate weights stored transposed as (1, d_in) for lane-friendly reduce
            'gate_w_in':  (jax.random.normal(k4, (1, d_in)) * xavier).astype(jnp.float32),
            'gate_b_in':  (jax.random.normal(k5, (1,)) * 0.05).astype(jnp.float32),
            'gate_w_out': (jax.random.normal(k6, (1, d_in)) * xavier).astype(jnp.float32),
            'gate_b_out': (jax.random.normal(k7, (1,)) * 0.05).astype(jnp.float32),
            'gamma': (1.0 + 0.1 * jax.random.normal(k8, (1, 2 * hidden_dim))).astype(jnp.float32),
            'beta':  (0.1 * jax.random.normal(k9, (1, 2 * hidden_dim))).astype(jnp.float32),
        })
    return layers


if __name__ == "__main__":
    key = jax.random.PRNGKey(0)
    B, N, D_IN, HIDDEN, N_LAYERS = 2, 8, 96, 64, 3   # 2H = 128 -> lane-dense out
    GRAPH_TYPE, GCN_GATE, RESIDUAL = 'dependent', True, True

    k_adj, k_x, k_p = jax.random.split(key, 3)
    adj = (jax.random.uniform(k_adj, (B, N, N)) > 0.5).astype(jnp.float32)
    x = jax.random.normal(k_x, (B, N, D_IN), dtype=jnp.float32)
    layer_params = init_gcn_params(k_p, D_IN, HIDDEN, N_LAYERS)
    prepared = prepare_gcn_params(layer_params)      # hoisted once per model

    out = gcn_forward(adj, x, prepared, GRAPH_TYPE, GCN_GATE, RESIDUAL)
    out = jax.block_until_ready(out)

    ref = gcn_forward_ref(adj, x, layer_params, GRAPH_TYPE, GCN_GATE, RESIDUAL)
    assert out.shape == (B, N, 2 * HIDDEN)
    assert jnp.allclose(out, ref, atol=2e-2, rtol=2e-2), "mismatch vs JAX reference"

    print("KERNEL_OK")
</pallas_src>

<mosaic_0001>
module attributes {stable_mosaic.version = 11 : i64} {
  func.func @kernel(%arg0: i32, %arg1: memref<1x8x8xbf16, #tpu.memory_space<vmem>>, %arg2: memref<1x8x8xbf16, #tpu.memory_space<vmem>>, %arg3: memref<1x8x128xf32, #tpu.memory_space<vmem>>, %arg4: memref<1x8x1xf32, #tpu.memory_space<vmem>>, %arg5: memref<1x8x1xf32, #tpu.memory_space<vmem>>, %arg6: memref<256x128xbf16, #tpu.memory_space<vmem>>, %arg7: memref<1x128xf32, #tpu.memory_space<vmem>>, %arg8: memref<1x128xf32, #tpu.memory_space<vmem>>, %arg9: memref<1x128xf32, #tpu.memory_space<vmem>>, %arg10: memref<2xf32, #tpu.memory_space<smem>>, %arg11: memref<1x128xf32, #tpu.memory_space<vmem>>, %arg12: memref<1x128xf32, #tpu.memory_space<vmem>>, %arg13: memref<1x8x128xbf16, #tpu.memory_space<vmem>>) attributes {dimension_semantics = [#tpu.dimension_semantics<parallel>], iteration_bounds = array<i64: 2>, scalar_prefetch = 0 : i64, scratch_operands = 0 : i64, tpu.core_type = #tpu.core_type<tc>, window_params = [{transform_indices = @transform_0, window_bounds = array<i64: 1, 8, 8>}, {transform_indices = @transform_1, window_bounds = array<i64: 1, 8, 8>}, {transform_indices = @transform_2, window_bounds = array<i64: 1, 8, 128>}, {transform_indices = @transform_3, window_bounds = array<i64: 1, 8, 1>}, {transform_indices = @transform_4, window_bounds = array<i64: 1, 8, 1>}, {pipeline_mode = #tpu.pipeline_mode<synchronous>, transform_indices = @transform_5, window_bounds = array<i64: 256, 128>}, {pipeline_mode = #tpu.pipeline_mode<synchronous>, transform_indices = @transform_6, window_bounds = array<i64: 1, 128>}, {pipeline_mode = #tpu.pipeline_mode<synchronous>, transform_indices = @transform_7, window_bounds = array<i64: 1, 128>}, {pipeline_mode = #tpu.pipeline_mode<synchronous>, transform_indices = @transform_8, window_bounds = array<i64: 1, 128>}, {transform_indices = @transform_9, window_bounds = array<i64: 2>}, {pipeline_mode = #tpu.pipeline_mode<synchronous>, transform_indices = @transform_10, window_bounds = array<i64: 1, 128>}, {pipeline_mode = #tpu.pipeline_mode<synchronous>, transform_indices = @transform_11, window_bounds = array<i64: 1, 128>}, {transform_indices = @transform_12, window_bounds = array<i64: 1, 8, 128>}]} {
    %c0 = arith.constant 0 : index
    %c0_0 = arith.constant 0 : index
    %c0_1 = arith.constant 0 : index
    %0 = vector.load %arg3[%c0, %c0_0, %c0_1] : memref<1x8x128xf32, #tpu.memory_space<vmem>>, vector<1x8x128xf32>
    %1 = arith.truncf %0 : vector<1x8x128xf32> to vector<1x8x128xbf16>
    %c0_2 = arith.constant 0 : index
    %c0_3 = arith.constant 0 : index
    %c0_4 = arith.constant 0 : index
    %2 = vector.load %arg1[%c0_2, %c0_3, %c0_4] : memref<1x8x8xbf16, #tpu.memory_space<vmem>>, vector<1x8x8xbf16>
    "tpu.trace_start"() <{level = 10 : i32, message = "bij,bjd->bid"}> : () -> ()
    %cst = arith.constant dense<0.000000e+00> : vector<1x8x128xf32>
    %3 = tpu.matmul %2, %1, %cst {dimension_numbers = #tpu.dot_dimension_numbers<[2], [1], [1], [2], [0, 0, 0, 1, 1, 2], [0], [0]>} : vector<1x8x8xbf16>, vector<1x8x128xbf16>, vector<1x8x128xf32> -> vector<1x8x128xf32>
    "tpu.trace_stop"() : () -> ()
    %4 = vector.shape_cast %3 : vector<1x8x128xf32> to vector<8x128xf32>
    %c0_5 = arith.constant 0 : index
    %c0_6 = arith.constant 0 : index
    %c0_7 = arith.constant 0 : index
    %5 = vector.load %arg2[%c0_5, %c0_6, %c0_7] : memref<1x8x8xbf16, #tpu.memory_space<vmem>>, vector<1x8x8xbf16>
    "tpu.trace_start"() <{level = 10 : i32, message = "bij,bjd->bid"}> : () -> ()
    %cst_8 = arith.constant dense<0.000000e+00> : vector<1x8x128xf32>
    %6 = tpu.matmul %5, %1, %cst_8 {dimension_numbers = #tpu.dot_dimension_numbers<[2], [1], [1], [2], [0, 0, 0, 1, 1, 2], [0], [0]>} : vector<1x8x8xbf16>, vector<1x8x128xbf16>, vector<1x8x128xf32> -> vector<1x8x128xf32>
    "tpu.trace_stop"() : () -> ()
    %7 = vector.shape_cast %6 : vector<1x8x128xf32> to vector<8x128xf32>
    %8 = vector.shape_cast %0 : vector<1x8x128xf32> to vector<8x128xf32>
    %c0_9 = arith.constant 0 : index
    %c0_10 = arith.constant 0 : index
    %9 = vector.load %arg8[%c0_9, %c0_10] : memref<1x128xf32, #tpu.memory_space<vmem>>, vector<1x128xf32>
    %10 = vector.broadcast %9 : vector<1x128xf32> to vector<8x128xf32>
    %11 = arith.mulf %4, %10 : vector<8x128xf32>
    %cst_11 = arith.constant dense<0.000000e+00> : vector<8xf32>
    %12 = vector.multi_reduction <add>, %11, %cst_11 [1] : vector<8x128xf32> to vector<8xf32>
    %13 = vector.shape_cast %12 : vector<8xf32> to vector<8x1xf32>
    %14 = arith.negf %13 : vector<8x1xf32>
    %15 = math.exp %14 : vector<8x1xf32>
    %cst_12 = arith.constant 1.000000e+00 : f32
    %16 = vector.broadcast %cst_12 : f32 to vector<8x1xf32>
    %17 = arith.addf %16, %15 : vector<8x1xf32>
    %18 = arith.divf %16, %17 : vector<8x1xf32>
    %19 = vector.broadcast %18 : vector<8x1xf32> to vector<8x128xf32>
    %20 = arith.mulf %4, %19 : vector<8x128xf32>
    %c0_13 = arith.constant 0 : index
    %21 = memref.load %arg10[%c0_13] : memref<2xf32, #tpu.memory_space<smem>>
    %22 = vector.broadcast %21 : f32 to vector<8x128xf32>
    %23 = arith.addf %20, %22 : vector<8x128xf32>
    %c0_14 = arith.constant 0 : index
    %c0_15 = arith.constant 0 : index
    %24 = vector.load %arg9[%c0_14, %c0_15] : memref<1x128xf32, #tpu.memory_space<vmem>>, vector<1x128xf32>
    %25 = vector.broadcast %24 : vector<1x128xf32> to vector<8x128xf32>
    %26 = arith.mulf %7, %25 : vector<8x128xf32>
    %cst_16 = arith.constant dense<0.000000e+00> : vector<8xf32>
    %27 = vector.multi_reduction <add>, %26, %cst_16 [1] : vector<8x128xf32> to vector<8xf32>
    %28 = vector.shape_cast %27 : vector<8xf32> to vector<8x1xf32>
    %29 = arith.negf %28 : vector<8x1xf32>
    %30 = math.exp %29 : vector<8x1xf32>
    %cst_17 = arith.constant 1.000000e+00 : f32
    %31 = vector.broadcast %cst_17 : f32 to vector<8x1xf32>
    %32 = arith.addf %31, %30 : vector<8x1xf32>
    %33 = arith.divf %31, %32 : vector<8x1xf32>
    %34 = vector.broadcast %33 : vector<8x1xf32> to vector<8x128xf32>
    %35 = arith.mulf %7, %34 : vector<8x128xf32>
    %c1 = arith.constant 1 : index
    %36 = memref.load %arg10[%c1] : memref<2xf32, #tpu.memory_space<smem>>
    %37 = vector.broadcast %36 : f32 to vector<8x128xf32>
    %38 = arith.addf %35, %37 : vector<8x128xf32>
    %39 = arith.addf %23, %8 : vector<8x128xf32>
    %40 = arith.truncf %39 : vector<8x128xf32> to vector<8x128xbf16>
    %41 = arith.addf %38, %8 : vector<8x128xf32>
    %42 = arith.truncf %41 : vector<8x128xf32> to vector<8x128xbf16>
    %43 = tpu.concatenate %40, %42 in 1 : vector<8x128xbf16>, vector<8x128xbf16> -> vector<8x256xbf16>
    %c0_18 = arith.constant 0 : index
    %c0_19 = arith.constant 0 : index
    %44 = vector.load %arg6[%c0_18, %c0_19] : memref<256x128xbf16, #tpu.memory_space<vmem>>, vector<256x128xbf16>
    %cst_20 = arith.constant dense<0.000000e+00> : vector<8x128xf32>
    %45 = tpu.matmul %43, %44, %cst_20 {dimension_numbers = #tpu.dot_dimension_numbers<[1], [0], [0], [1], [0, 0, 1, 1], [], []>} : vector<8x256xbf16>, vector<256x128xbf16>, vector<8x128xf32> -> vector<8x128xf32>
    %c0_21 = arith.constant 0 : index
    %c0_22 = arith.constant 0 : index
    %46 = vector.load %arg7[%c0_21, %c0_22] : memref<1x128xf32, #tpu.memory_space<vmem>>, vector<1x128xf32>
    %47 = vector.broadcast %46 : vector<1x128xf32> to vector<8x128xf32>
    %48 = arith.addf %45, %47 : vector<8x128xf32>
    %49 = tpu.iota {dimensions = array<i32: 1>} : vector<8x128xi32>
    %c64_i32 = arith.constant 64 : i32
    %50 = vector.broadcast %c64_i32 : i32 to vector<8x128xi32>
    %51 = arith.cmpi slt, %49, %50 : vector<8x128xi32>
    %c0_23 = arith.constant 0 : index
    %c0_24 = arith.constant 0 : index
    %c0_25 = arith.constant 0 : index
    %52 = vector.load %arg4[%c0_23, %c0_24, %c0_25] : memref<1x8x1xf32, #tpu.memory_space<vmem>>, vector<1x8x1xf32>
    %53 = vector.shape_cast %52 : vector<1x8x1xf32> to vector<8x1xf32>
    %c0_26 = arith.constant 0 : index
    %c0_27 = arith.constant 0 : index
    %c0_28 = arith.constant 0 : index
    %54 = vector.load %arg5[%c0_26, %c0_27, %c0_28] : memref<1x8x1xf32, #tpu.memory_space<vmem>>, vector<1x8x1xf32>
    %55 = vector.shape_cast %54 : vector<1x8x1xf32> to vector<8x1xf32>
    %56 = vector.shape_cast %53 : vector<8x1xf32> to vector<8x1xf32>
    %57 = vector.broadcast %56 : vector<8x1xf32> to vector<8x128xf32>
    %58 = vector.shape_cast %55 : vector<8x1xf32> to vector<8x1xf32>
    %59 = vector.broadcast %58 : vector<8x1xf32> to vector<8x128xf32>
    %60 = arith.select %51, %57, %59 : vector<8x128xi1>, vector<8x128xf32>
    %61 = arith.mulf %48, %60 : vector<8x128xf32>
    %cst_29 = arith.constant dense<0.000000e+00> : vector<8xf32>
    %62 = vector.multi_reduction <add>, %61, %cst_29 [1] : vector<8x128xf32> to vector<8xf32>
    %63 = vector.shape_cast %62 : vector<8xf32> to vector<8x1xf32>
    %cst_30 = arith.constant 7.812500e-03 : f32
    %64 = vector.broadcast %cst_30 : f32 to vector<8x1xf32>
    %65 = arith.mulf %63, %64 : vector<8x1xf32>
    %66 = vector.broadcast %65 : vector<8x1xf32> to vector<8x128xf32>
    %67 = arith.subf %61, %66 : vector<8x128xf32>
    %68 = arith.mulf %67, %67 : vector<8x128xf32>
    %cst_31 = arith.constant dense<0.000000e+00> : vector<8xf32>
    %69 = vector.multi_reduction <add>, %68, %cst_31 [1] : vector<8x128xf32> to vector<8xf32>
    %70 = vector.shape_cast %69 : vector<8xf32> to vector<8x1xf32>
    %cst_32 = arith.constant 7.812500e-03 : f32
    %71 = vector.broadcast %cst_32 : f32 to vector<8x1xf32>
    %72 = arith.mulf %70, %71 : vector<8x1xf32>
    %cst_33 = arith.constant 9.99999974E-6 : f32
    %73 = vector.broadcast %cst_33 : f32 to vector<8x1xf32>
    %74 = arith.addf %72, %73 : vector<8x1xf32>
    %75 = math.rsqrt %74 : vector<8x1xf32>
    %76 = vector.broadcast %75 : vector<8x1xf32> to vector<8x128xf32>
    %77 = arith.mulf %67, %76 : vector<8x128xf32>
    %c0_34 = arith.constant 0 : index
    %c0_35 = arith.constant 0 : index
    %78 = vector.load %arg11[%c0_34, %c0_35] : memref<1x128xf32, #tpu.memory_space<vmem>>, vector<1x128xf32>
    %79 = vector.broadcast %78 : vector<1x128xf32> to vector<8x128xf32>
    %80 = arith.mulf %77, %79 : vector<8x128xf32>
    %c0_36 = arith.constant 0 : index
    %c0_37 = arith.constant 0 : index
    %81 = vector.load %arg12[%c0_36, %c0_37] : memref<1x128xf32, #tpu.memory_space<vmem>>, vector<1x128xf32>
    %82 = vector.broadcast %81 : vector<1x128xf32> to vector<8x128xf32>
    %83 = arith.addf %80, %82 : vector<8x128xf32>
    %cst_38 = arith.constant 5.000000e-01 : f32
    %84 = vector.broadcast %cst_38 : f32 to vector<8x128xf32>
    %85 = arith.mulf %84, %83 : vector<8x128xf32>
    %cst_39 = arith.constant 4.471500e-02 : f32
    %86 = vector.broadcast %cst_39 : f32 to vector<8x128xf32>
    %87 = arith.mulf %86, %83 : vector<8x128xf32>
    %88 = arith.mulf %87, %83 : vector<8x128xf32>
    %89 = arith.mulf %88, %83 : vector<8x128xf32>
    %90 = arith.addf %83, %89 : vector<8x128xf32>
    %cst_40 = arith.constant 0.797884583 : f32
    %91 = vector.broadcast %cst_40 : f32 to vector<8x128xf32>
    %92 = arith.mulf %91, %90 : vector<8x128xf32>
    %93 = math.tanh %92 : vector<8x128xf32>
    %cst_41 = arith.constant 1.000000e+00 : f32
    %94 = vector.broadcast %cst_41 : f32 to vector<8x128xf32>
    %95 = arith.addf %94, %93 : vector<8x128xf32>
    %96 = arith.mulf %85, %95 : vector<8x128xf32>
    %97 = vector.shape_cast %96 : vector<8x128xf32> to vector<1x8x128xf32>
    %98 = arith.truncf %97 : vector<1x8x128xf32> to vector<1x8x128xbf16>
    %c0_42 = arith.constant 0 : index
    %c0_43 = arith.constant 0 : index
    %c0_44 = arith.constant 0 : index
    %99 = vector.load %arg13[%c0_42, %c0_43, %c0_44] : memref<1x8x128xbf16, #tpu.memory_space<vmem>>, vector<1x8x128xbf16>
    tpu.vector_store %arg13[%c0_42, %c0_43, %c0_44], %98 {strides = array<i32>} : memref<1x8x128xbf16, #tpu.memory_space<vmem>>, vector<1x8x128xbf16>,
    return
  }
  func.func @transform_0(%arg0: i32) -> (i32, i32, i32) {
    %c0_i32 = arith.constant 0 : i32
    %c0_i32_0 = arith.constant 0 : i32
    %c0_i32_1 = arith.constant 0 : i32
    return %arg0, %c0_i32, %c0_i32_0 : i32, i32, i32
  }
  func.func @transform_1(%arg0: i32) -> (i32, i32, i32) {
    %c0_i32 = arith.constant 0 : i32
    %c0_i32_0 = arith.constant 0 : i32
    %c0_i32_1 = arith.constant 0 : i32
    return %arg0, %c0_i32, %c0_i32_0 : i32, i32, i32
  }
  func.func @transform_2(%arg0: i32) -> (i32, i32, i32) {
    %c0_i32 = arith.constant 0 : i32
    %c0_i32_0 = arith.constant 0 : i32
    %c0_i32_1 = arith.constant 0 : i32
    return %arg0, %c0_i32, %c0_i32_0 : i32, i32, i32
  }
  func.func @transform_3(%arg0: i32) -> (i32, i32, i32) {
    %c0_i32 = arith.constant 0 : i32
    %c0_i32_0 = arith.constant 0 : i32
    %c0_i32_1 = arith.constant 0 : i32
    return %arg0, %c0_i32, %c0_i32_0 : i32, i32, i32
  }
  func.func @transform_4(%arg0: i32) -> (i32, i32, i32) {
    %c0_i32 = arith.constant 0 : i32
    %c0_i32_0 = arith.constant 0 : i32
    %c0_i32_1 = arith.constant 0 : i32
    return %arg0, %c0_i32, %c0_i32_0 : i32, i32, i32
  }
  func.func @transform_5(%arg0: i32) -> (i32, i32) {
    %c0_i32 = arith.constant 0 : i32
    %c0_i32_0 = arith.constant 0 : i32
    %c0_i32_1 = arith.constant 0 : i32
    return %c0_i32, %c0_i32_0 : i32, i32
  }
  func.func @transform_6(%arg0: i32) -> (i32, i32) {
    %c0_i32 = arith.constant 0 : i32
    %c0_i32_0 = arith.constant 0 : i32
    %c0_i32_1 = arith.constant 0 : i32
    return %c0_i32, %c0_i32_0 : i32, i32
  }
  func.func @transform_7(%arg0: i32) -> (i32, i32) {
    %c0_i32 = arith.constant 0 : i32
    %c0_i32_0 = arith.constant 0 : i32
    %c0_i32_1 = arith.constant 0 : i32
    return %c0_i32, %c0_i32_0 : i32, i32
  }
  func.func @transform_8(%arg0: i32) -> (i32, i32) {
    %c0_i32 = arith.constant 0 : i32
    %c0_i32_0 = arith.constant 0 : i32
    %c0_i32_1 = arith.constant 0 : i32
    return %c0_i32, %c0_i32_0 : i32, i32
  }
  func.func @transform_9(%arg0: i32) -> i32 {
    %c0_i32 = arith.constant 0 : i32
    %c0_i32_0 = arith.constant 0 : i32
    return %c0_i32 : i32
  }
  func.func @transform_10(%arg0: i32) -> (i32, i32) {
    %c0_i32 = arith.constant 0 : i32
    %c0_i32_0 = arith.constant 0 : i32
    %c0_i32_1 = arith.constant 0 : i32
    return %c0_i32, %c0_i32_0 : i32, i32
  }
  func.func @transform_11(%arg0: i32) -> (i32, i32) {
    %c0_i32 = arith.constant 0 : i32
    %c0_i32_0 = arith.constant 0 : i32
    %c0_i32_1 = arith.constant 0 : i32
    return %c0_i32, %c0_i32_0 : i32, i32
  }
  func.func @transform_12(%arg0: i32) -> (i32, i32, i32) {
    %c0_i32 = arith.constant 0 : i32
    %c0_i32_0 = arith.constant 0 : i32
    %c0_i32_1 = arith.constant 0 : i32
    return %arg0, %c0_i32, %c0_i32_0 : i32, i32, i32
  }
}

</mosaic_0001>

<llo_original>
// kernel: tpu_custom_call.1
$region0: #{tpu_custom_call.1}
  #allocation0 [shape = 'u32[]', space=smem, size = 0x4, offset = 0x4, fixed_abs, tag = 'smem constant byte address 0x4 - core index']
  #allocation1 [shape = 'u32[144,128]{1,0:T(1,128)}', space=vmem, size = 0x12000, scoped, tag = 'internal scratch']
  %s0 = inlined_call_operand.vmem [shape: bf16[2,8,8], index: 0, kind: input, shape index: {}]
  %s1 = inlined_call_operand.vmem [shape: bf16[2,8,8], index: 1, kind: input, shape index: {}]
  %s2 = inlined_call_operand.vmem [shape: f32[2,8,128], index: 2, kind: input, shape index: {}]
  %s3 = inlined_call_operand.vmem [shape: f32[2,8,1], index: 3, kind: input, shape index: {}]
  %s4 = inlined_call_operand.vmem [shape: f32[2,8,1], index: 4, kind: input, shape index: {}]
  %s5 = inlined_call_operand.hbm [shape: bf16[256,128], index: 5, kind: input, shape index: {}]
  %s6 = inlined_call_operand.vmem [shape: f32[1,128], index: 6, kind: input, shape index: {}]
  %s7 = inlined_call_operand.vmem [shape: f32[1,128], index: 7, kind: input, shape index: {}]
  %s8 = inlined_call_operand.vmem [shape: f32[1,128], index: 8, kind: input, shape index: {}]
  %s9 = inlined_call_operand.vmem [shape: f32[2], index: 9, kind: input, shape index: {}]
  %s10 = inlined_call_operand.vmem [shape: f32[1,128], index: 10, kind: input, shape index: {}]
  %s11 = inlined_call_operand.vmem [shape: f32[1,128], index: 11, kind: input, shape index: {}]
  %s12 = inlined_call_operand.hbm [shape: bf16[2,8,128], index: 12, kind: output, shape index: {}]
  %s13 = sld [smem:[#allocation0]]
  $region89: #{tpu_custom_call.1} parent=0
    _
  %s15 = ssub.s32 1, %s13
  %s16 = scalar_select 0, %s15, %s13
  $region1: #{tpu_custom_call.1} parent=0
    #allocation2 [shape = 'u8[65536]{0}', space=vmem, size = 0x10000, scoped, tag = 'input window, operand 5, single buffered']
    #allocation3 [shape = 's32[2]{0}', space=sflag, size = 0x8, scoped, tag = 'scoped memory for tpu_custom_call.1']
    #allocation4 [shape = 's32[2]{0}', space=sflag, size = 0x8, scoped, tag = 'scoped memory for tpu_custom_call.1']
    #allocation5 [shape = 's32[2]{0}', space=sflag, size = 0x8, scoped, tag = 'scoped memory for tpu_custom_call.1']
    #allocation6 [shape = 'u8[512]{0}', space=smem, size = 0x200, scoped, tag = 'input window, operand 9, single buffered']
    #allocation7 [shape = 'u8[4096]{0}', space=vmem, size = 0x1000, scoped, tag = 'output window, operand 0']
    %17 = vsyncpa [#allocation3], 0
    %18 = vsyncpa [#allocation5], 0
    %19 = vsyncpa [#allocation4], 0
    %s20 = scalar_lea.sflag [#allocation4], 1
    %21 = vsyncpa %s20, 0
    loop: start=0, step=1, limit=4
    $region2: #{tpu_custom_call.1} parent=1 // loop_pre_header
      _
    $region3: #{tpu_custom_call.1} parent=1 // loop_header
      %s23 = sphi 0, %s27
      %p24 = scmp.ge.s32.totalorder %s23, 4
      %s33 = sphi 0, %s35
      %s36 = sphi 0, %s33
      %s37 = sphi 0, %s36
      %s53 = sphi 0, %s37
      %s59 = sphi 0, %s61
      %s62 = sphi 0, %s59
      %s63 = sphi 0, %s62
      %s79 = sphi 0, %s63
      %s85 = sphi 0, %s87
      %s88 = sphi 0, %s85
      %s89 = sphi 0, %s88
      %s105 = sphi 0, %s89
      %s111 = sphi 0, %s113
      %s114 = sphi 0, %s111
      %s115 = sphi 0, %s114
      %s131 = sphi 0, %s115
      %s137 = sphi 0, %s139
      %s140 = sphi 0, %s137
      %s141 = sphi 0, %s140
      %s157 = sphi 0, %s141
      %s161 = sphi 0, %s161
      %s163 = sphi 0, %s161
      %s164 = sphi 0, %s163
      %s178 = sphi 0, %s164
      %s182 = sphi 0, %s182
      %s184 = sphi 0, %s182
      %s185 = sphi 0, %s184
      %s199 = sphi 0, %s185
      %s203 = sphi 0, %s203
      %s205 = sphi 0, %s203
      %s206 = sphi 0, %s205
      %s220 = sphi 0, %s206
      %s224 = sphi 0, %s224
      %s226 = sphi 0, %s224
      %s227 = sphi 0, %s226
      %s241 = sphi 0, %s227
      %s245 = sphi 0, %s245
      %s247 = sphi 0, %s245
      %s248 = sphi 0, %s247
      %s262 = sphi 0, %s248
      %s266 = sphi 0, %s266
      %s268 = sphi 0, %s266
      %s269 = sphi 0, %s268
      %s283 = sphi 0, %s269
      %s287 = sphi 0, %s287
      %s289 = sphi 0, %s287
      %s290 = sphi 0, %s289
      %s304 = sphi 0, %s290
      %s310 = sphi 0, %s312
      %s313 = sphi 0, %s310
      %s314 = sphi 0, %s313
      %s330 = sphi 0, %s314
    $region4: #{tpu_custom_call.1} parent=1 // loop_header_branch
      %26 = sbr.rel (%p24) target = $region8
    $region5: #{tpu_custom_call.1} parent=1 // loop_body
      %s28 = ssub.s32 %s23, 1
      %s29 = ssub.s32 %s23, 2
      %s30 = sadd.s32 %s23, 1
      %s31 = ssub.s32 %s23, %s30
      %p32 = scmp.eq.s32.totalorder %s31, 0
      %s34 = sadd.s32 %s33, 1
      %s35 = scalar_select %p32, %s33, %s34
      %p38 = pneg %p32
      %p39 = scmp.eq.s32.totalorder %s23, 1
      %p40 = por %p38, %p39
      %p41 = scmp.ne.s32.totalorder %s33, %s36
      %p42 = scmp.eq.s32.totalorder %s23, 0
      %p43 = por %p41, %p42
      %p44 = scmp.ne.s32.totalorder %s33, %s36
      %p45 = scmp.eq.s32.totalorder %s28, 1
      %p46 = por %p44, %p45
      %p47 = scmp.ne.s32.totalorder %s36, %s37
      %p48 = scmp.eq.s32.totalorder %s28, 0
      %p49 = por %p47, %p48
      %p50 = scmp.ne.s32.totalorder %s36, %s37
      %p51 = scmp.eq.s32.totalorder %s29, 1
      %p52 = por %p50, %p51
      %p54 = scmp.ne.s32.totalorder %s37, %s53
      %p55 = scmp.eq.s32.totalorder %s29, 0
      %p56 = por %p54, %p55
      %s57 = ssub.s32 %s23, %s30
      %p58 = scmp.eq.s32.totalorder %s57, 0
      %s60 = sadd.s32 %s59, 1
      %s61 = scalar_select %p58, %s59, %s60
      %p64 = pneg %p58
      %p65 = scmp.eq.s32.totalorder %s23, 1
      %p66 = por %p64, %p65
      %p67 = scmp.ne.s32.totalorder %s59, %s62
      %p68 = scmp.eq.s32.totalorder %s23, 0
      %p69 = por %p67, %p68
      %p70 = scmp.ne.s32.totalorder %s59, %s62
      %p71 = scmp.eq.s32.totalorder %s28, 1
      %p72 = por %p70, %p71
      %p73 = scmp.ne.s32.totalorder %s62, %s63
      %p74 = scmp.eq.s32.totalorder %s28, 0
      %p75 = por %p73, %p74
      %p76 = scmp.ne.s32.totalorder %s62, %s63
      %p77 = scmp.eq.s32.totalorder %s29, 1
      %p78 = por %p76, %p77
      %p80 = scmp.ne.s32.totalorder %s63, %s79
      %p81 = scmp.eq.s32.totalorder %s29, 0
      %p82 = por %p80, %p81
      %s83 = ssub.s32 %s23, %s30
      %p84 = scmp.eq.s32.totalorder %s83, 0
      %s86 = sadd.s32 %s85, 1
      %s87 = scalar_select %p84, %s85, %s86
      %p90 = pneg %p84
      %p91 = scmp.eq.s32.totalorder %s23, 1
      %p92 = por %p90, %p91
      %p93 = scmp.ne.s32.totalorder %s85, %s88
      %p94 = scmp.eq.s32.totalorder %s23, 0
      %p95 = por %p93, %p94
      %p96 = scmp.ne.s32.totalorder %s85, %s88
      %p97 = scmp.eq.s32.totalorder %s28, 1
      %p98 = por %p96, %p97
      %p99 = scmp.ne.s32.totalorder %s88, %s89
      %p100 = scmp.eq.s32.totalorder %s28, 0
      %p101 = por %p99, %p100
      %p102 = scmp.ne.s32.totalorder %s88, %s89
      %p103 = scmp.eq.s32.totalorder %s29, 1
      %p104 = por %p102, %p103
      %p106 = scmp.ne.s32.totalorder %s89, %s105
      %p107 = scmp.eq.s32.totalorder %s29, 0
      %p108 = por %p106, %p107
      %s109 = ssub.s32 %s23, %s30
      %p110 = scmp.eq.s32.totalorder %s109, 0
      %s112 = sadd.s32 %s111, 1
      %s113 = scalar_select %p110, %s111, %s112
      %p116 = pneg %p110
      %p117 = scmp.eq.s32.totalorder %s23, 1
      %p118 = por %p116, %p117
      %p119 = scmp.ne.s32.totalorder %s111, %s114
      %p120 = scmp.eq.s32.totalorder %s23, 0
      %p121 = por %p119, %p120
      %p122 = scmp.ne.s32.totalorder %s111, %s114
      %p123 = scmp.eq.s32.totalorder %s28, 1
      %p124 = por %p122, %p123
      %p125 = scmp.ne.s32.totalorder %s114, %s115
      %p126 = scmp.eq.s32.totalorder %s28, 0
      %p127 = por %p125, %p126
      %p128 = scmp.ne.s32.totalorder %s114, %s115
      %p129 = scmp.eq.s32.totalorder %s29, 1
      %p130 = por %p128, %p129
      %p132 = scmp.ne.s32.totalorder %s115, %s131
      %p133 = scmp.eq.s32.totalorder %s29, 0
      %p134 = por %p132, %p133
      %s135 = ssub.s32 %s23, %s30
      %p136 = scmp.eq.s32.totalorder %s135, 0
      %s138 = sadd.s32 %s137, 1
      %s139 = scalar_select %p136, %s137, %s138
      %p142 = pneg %p136
      %p143 = scmp.eq.s32.totalorder %s23, 1
      %p144 = por %p142, %p143
      %p145 = scmp.ne.s32.totalorder %s137, %s140
      %p146 = scmp.eq.s32.totalorder %s23, 0
      %p147 = por %p145, %p146
      %p148 = scmp.ne.s32.totalorder %s137, %s140
      %p149 = scmp.eq.s32.totalorder %s28, 1
      %p150 = por %p148, %p149
      %p151 = scmp.ne.s32.totalorder %s140, %s141
      %p152 = scmp.eq.s32.totalorder %s28, 0
      %p153 = por %p151, %p152
      %p154 = scmp.ne.s32.totalorder %s140, %s141
      %p155 = scmp.eq.s32.totalorder %s29, 1
      %p156 = por %p154, %p155
      %p158 = scmp.ne.s32.totalorder %s141, %s157
      %p159 = scmp.eq.s32.totalorder %s29, 0
      %p160 = por %p158, %p159
      %s162 = sadd.s32 %s161, 1
      %p165 = scmp.eq.s32.totalorder %s23, 1
      %p166 = scmp.ne.s32.totalorder %s161, %s163
      %p167 = scmp.eq.s32.totalorder %s23, 0
      %p168 = por %p166, %p167
      %p169 = scmp.ne.s32.totalorder %s161, %s163
      %p170 = scmp.eq.s32.totalorder %s28, 1
      %p171 = por %p169, %p170
      %p172 = scmp.ne.s32.totalorder %s163, %s164
      %p173 = scmp.eq.s32.totalorder %s28, 0
      %p174 = por %p172, %p173
      %p175 = scmp.ne.s32.totalorder %s163, %s164
      %p176 = scmp.eq.s32.totalorder %s29, 1
      %p177 = por %p175, %p176
      %p179 = scmp.ne.s32.totalorder %s164, %s178
      %p180 = scmp.eq.s32.totalorder %s29, 0
      %p181 = por %p179, %p180
      %s183 = sadd.s32 %s182, 1
      %p186 = scmp.eq.s32.totalorder %s23, 1
      %p187 = scmp.ne.s32.totalorder %s182, %s184
      %p188 = scmp.eq.s32.totalorder %s23, 0
      %p189 = por %p187, %p188
      %p190 = scmp.ne.s32.totalorder %s182, %s184
      %p191 = scmp.eq.s32.totalorder %s28, 1
      %p192 = por %p190, %p191
      %p193 = scmp.ne.s32.totalorder %s184, %s185
      %p194 = scmp.eq.s32.totalorder %s28, 0
      %p195 = por %p193, %p194
      %p196 = scmp.ne.s32.totalorder %s184, %s185
      %p197 = scmp.eq.s32.totalorder %s29, 1
      %p198 = por %p196, %p197
      %p200 = scmp.ne.s32.totalorder %s185, %s199
      %p201 = scmp.eq.s32.totalorder %s29, 0
      %p202 = por %p200, %p201
      %s204 = sadd.s32 %s203, 1
      %p207 = scmp.eq.s32.totalorder %s23, 1
      %p208 = scmp.ne.s32.totalorder %s203, %s205
      %p209 = scmp.eq.s32.totalorder %s23, 0
      %p210 = por %p208, %p209
      %p211 = scmp.ne.s32.totalorder %s203, %s205
      %p212 = scmp.eq.s32.totalorder %s28, 1
      %p213 = por %p211, %p212
      %p214 = scmp.ne.s32.totalorder %s205, %s206
      %p215 = scmp.eq.s32.totalorder %s28, 0
      %p216 = por %p214, %p215
      %p217 = scmp.ne.s32.totalorder %s205, %s206
      %p218 = scmp.eq.s32.totalorder %s29, 1
      %p219 = por %p217, %p218
      %p221 = scmp.ne.s32.totalorder %s206, %s220
      %p222 = scmp.eq.s32.totalorder %s29, 0
      %p223 = por %p221, %p222
      %s225 = sadd.s32 %s224, 1
      %p228 = scmp.eq.s32.totalorder %s23, 1
      %p229 = scmp.ne.s32.totalorder %s224, %s226
      %p230 = scmp.eq.s32.totalorder %s23, 0
      %p231 = por %p229, %p230
      %p232 = scmp.ne.s32.totalorder %s224, %s226
      %p233 = scmp.eq.s32.totalorder %s28, 1
      %p234 = por %p232, %p233
      %p235 = scmp.ne.s32.totalorder %s226, %s227
      %p236 = scmp.eq.s32.totalorder %s28, 0
      %p237 = por %p235, %p236
      %p238 = scmp.ne.s32.totalorder %s226, %s227
      %p239 = scmp.eq.s32.totalorder %s29, 1
      %p240 = por %p238, %p239
      %p242 = scmp.ne.s32.totalorder %s227, %s241
      %p243 = scmp.eq.s32.totalorder %s29, 0
      %p244 = por %p242, %p243
      %s246 = sadd.s32 %s245, 1
      %p249 = scmp.eq.s32.totalorder %s23, 1
      %p250 = scmp.ne.s32.totalorder %s245, %s247
      %p251 = scmp.eq.s32.totalorder %s23, 0
      %p252 = por %p250, %p251
      %p253 = scmp.ne.s32.totalorder %s245, %s247
      %p254 = scmp.eq.s32.totalorder %s28, 1
      %p255 = por %p253, %p254
      %p256 = scmp.ne.s32.totalorder %s247, %s248
      %p257 = scmp.eq.s32.totalorder %s28, 0
      %p258 = por %p256, %p257
      %p259 = scmp.ne.s32.totalorder %s247, %s248
      %p260 = scmp.eq.s32.totalorder %s29, 1
      %p261 = por %p259, %p260
      %p263 = scmp.ne.s32.totalorder %s248, %s262
      %p264 = scmp.eq.s32.totalorder %s29, 0
      %p265 = por %p263, %p264
      %s267 = sadd.s32 %s266, 1
      %p270 = scmp.eq.s32.totalorder %s23, 1
      %p271 = scmp.ne.s32.totalorder %s266, %s268
      %p272 = scmp.eq.s32.totalorder %s23, 0
      %p273 = por %p271, %p272
      %p274 = scmp.ne.s32.totalorder %s266, %s268
      %p275 = scmp.eq.s32.totalorder %s28, 1
      %p276 = por %p274, %p275
      %p277 = scmp.ne.s32.totalorder %s268, %s269
      %p278 = scmp.eq.s32.totalorder %s28, 0
      %p279 = por %p277, %p278
      %p280 = scmp.ne.s32.totalorder %s268, %s269
      %p281 = scmp.eq.s32.totalorder %s29, 1
      %p282 = por %p280, %p281
      %p284 = scmp.ne.s32.totalorder %s269, %s283
      %p285 = scmp.eq.s32.totalorder %s29, 0
      %p286 = por %p284, %p285
      %s288 = sadd.s32 %s287, 1
      %p291 = scmp.eq.s32.totalorder %s23, 1
      %p292 = scmp.ne.s32.totalorder %s287, %s289
      %p293 = scmp.eq.s32.totalorder %s23, 0
      %p294 = por %p292, %p293
      %p295 = scmp.ne.s32.totalorder %s287, %s289
      %p296 = scmp.eq.s32.totalorder %s28, 1
      %p297 = por %p295, %p296
      %p298 = scmp.ne.s32.totalorder %s289, %s290
      %p299 = scmp.eq.s32.totalorder %s28, 0
      %p300 = por %p298, %p299
      %p301 = scmp.ne.s32.totalorder %s289, %s290
      %p302 = scmp.eq.s32.totalorder %s29, 1
      %p303 = por %p301, %p302
      %p305 = scmp.ne.s32.totalorder %s290, %s304
      %p306 = scmp.eq.s32.totalorder %s29, 0
      %p307 = por %p305, %p306
      %s308 = ssub.s32 %s23, %s30
      %p309 = scmp.eq.s32.totalorder %s308, 0
      %s311 = sadd.s32 %s310, 1
      %s312 = scalar_select %p309, %s310, %s311
      %p315 = pneg %p309
      %p316 = scmp.eq.s32.totalorder %s23, 1
      %p317 = por %p315, %p316
      %p318 = scmp.ne.s32.totalorder %s310, %s313
      %p319 = scmp.eq.s32.totalorder %s23, 0
      %p320 = por %p318, %p319
      %p321 = scmp.ne.s32.totalorder %s310, %s313
      %p322 = scmp.eq.s32.totalorder %s28, 1
      %p323 = por %p321, %p322
      %p324 = scmp.ne.s32.totalorder %s313, %s314
      %p325 = scmp.eq.s32.totalorder %s28, 0
      %p326 = por %p324, %p325
      %p327 = scmp.ne.s32.totalorder %s313, %s314
      %p328 = scmp.eq.s32.totalorder %s29, 1
      %p329 = por %p327, %p328
      %p331 = scmp.ne.s32.totalorder %s314, %s330
      %p332 = scmp.eq.s32.totalorder %s29, 0
      %p333 = por %p331, %p332
      %p334 = scmp.le.s32.totalorder 1, %s23
      %p335 = scmp.lt.s32.totalorder %s23, 3
      %p336 = pnand %p334, %p335
      %p337 = pneg %p336
      // Predicated region
      $region9: #{tpu_custom_call.1} parent=5 // pred_check
        _
      $region10: #{tpu_custom_call.1} parent=5 // pred_check_branch
        %339 = sbr.rel (%p336) target = $region12
      $region11: #{tpu_custom_call.1} parent=5 // pred_region
        %s340 = ssub.s32 %s23, 1
        // Predicated region
        $region13: #{tpu_custom_call.1} parent=11 // pred_check
          %p341 = pneg %p174
        $region14: #{tpu_custom_call.1} parent=11 // pred_check_branch
          %343 = sbr.rel (%p341) target = $region16
        $region15: #{tpu_custom_call.1} parent=11 // pred_region
          %s345 = ssub.s32 2048, 2048
          %346 = vsyncadd [#allocation3], %s345
          %s347 = sshll.u32 [#allocation2], 4
          %s348 = int_to_ptr.vmem [resolvable:$true] %s347
          %353 = dma.hbm_to_vmem [thread:$0]  %s5, 2048, %s348, [#allocation3], 64, 64, 4
        $region16: #{tpu_custom_call.1} parent=11 // pred_fallthru
          _
        // Predicated region
        $region17: #{tpu_custom_call.1} parent=11 // pred_check
          %p354 = pneg %p195
        $region18: #{tpu_custom_call.1} parent=11 // pred_check_branch
          %356 = sbr.rel (%p354) target = $region20
        $region19: #{tpu_custom_call.1} parent=11 // pred_region
          _
        $region20: #{tpu_custom_call.1} parent=11 // pred_fallthru
          _
        // Predicated region
        $region21: #{tpu_custom_call.1} parent=11 // pred_check
          %p357 = pneg %p216
        $region22: #{tpu_custom_call.1} parent=11 // pred_check_branch
          %359 = sbr.rel (%p357) target = $region24
        $region23: #{tpu_custom_call.1} parent=11 // pred_region
          _
        $region24: #{tpu_custom_call.1} parent=11 // pred_fallthru
          _
        // Predicated region
        $region25: #{tpu_custom_call.1} parent=11 // pred_check
          %p360 = pneg %p237
        $region26: #{tpu_custom_call.1} parent=11 // pred_check_branch
          %362 = sbr.rel (%p360) target = $region28
        $region27: #{tpu_custom_call.1} parent=11 // pred_region
          _
        $region28: #{tpu_custom_call.1} parent=11 // pred_fallthru
          _
        // Predicated region
        $region29: #{tpu_custom_call.1} parent=11 // pred_check
          %p363 = pneg %p258
        $region30: #{tpu_custom_call.1} parent=11 // pred_check_branch
          %365 = sbr.rel (%p363) target = $region32
        $region31: #{tpu_custom_call.1} parent=11 // pred_region
          %s367 = ssub.s32 16, 16
          %368 = vsyncadd [#allocation5], %s367
          %s370 = sshll.u32 %s9, 4
          %s371 = int_to_ptr.vmem [resolvable:$true] %s370
          %373 = dma.vmem_to_smem %s371, 16, [#allocation6], [#allocation5]
        $region32: #{tpu_custom_call.1} parent=11 // pred_fallthru
          _
        // Predicated region
        $region33: #{tpu_custom_call.1} parent=11 // pred_check
          %p374 = pneg %p279
        $region34: #{tpu_custom_call.1} parent=11 // pred_check_branch
          %376 = sbr.rel (%p374) target = $region36
        $region35: #{tpu_custom_call.1} parent=11 // pred_region
          _
        $region36: #{tpu_custom_call.1} parent=11 // pred_fallthru
          _
        // Predicated region
        $region37: #{tpu_custom_call.1} parent=11 // pred_check
          %p377 = pneg %p300
        $region38: #{tpu_custom_call.1} parent=11 // pred_check_branch
          %379 = sbr.rel (%p377) target = $region40
        $region39: #{tpu_custom_call.1} parent=11 // pred_region
          _
        $region40: #{tpu_custom_call.1} parent=11 // pred_fallthru
          _
      $region12: #{tpu_custom_call.1} parent=5 // pred_fallthru
        _
      %p380 = scmp.lt.s32.totalorder %s23, 2
      // Predicated region
      $region41: #{tpu_custom_call.1} parent=5 // pred_check
        %p381 = pneg %p380
      $region42: #{tpu_custom_call.1} parent=5 // pred_check_branch
        %383 = sbr.rel (%p381) target = $region44
      $region43: #{tpu_custom_call.1} parent=5 // pred_region
        // Predicated region
        $region45: #{tpu_custom_call.1} parent=43 // pred_check
          %p384 = pneg %p43
        $region46: #{tpu_custom_call.1} parent=43 // pred_check_branch
          %386 = sbr.rel (%p384) target = $region48
        $region47: #{tpu_custom_call.1} parent=43 // pred_region
          %p387 = scmp.lt.s32.totalorder %s23, 1
          %s388 = scalar_select %p387, %s23, 1
          %s389 = smul.addr %s388, 4
          %s390 = scalar_lea.vmem %s0, %s389
        $region48: #{tpu_custom_call.1} parent=43 // pred_fallthru
          _
        // Predicated region
        $region49: #{tpu_custom_call.1} parent=43 // pred_check
          %p391 = pneg %p69
        $region50: #{tpu_custom_call.1} parent=43 // pred_check_branch
          %393 = sbr.rel (%p391) target = $region52
        $region51: #{tpu_custom_call.1} parent=43 // pred_region
          %p394 = scmp.lt.s32.totalorder %s23, 1
          %s395 = scalar_select %p394, %s23, 1
          %s396 = smul.addr %s395, 4
          %s397 = scalar_lea.vmem %s1, %s396
        $region52: #{tpu_custom_call.1} parent=43 // pred_fallthru
          _
        // Predicated region
        $region53: #{tpu_custom_call.1} parent=43 // pred_check
          %p398 = pneg %p95
        $region54: #{tpu_custom_call.1} parent=43 // pred_check_branch
          %400 = sbr.rel (%p398) target = $region56
        $region55: #{tpu_custom_call.1} parent=43 // pred_region
          %p401 = scmp.lt.s32.totalorder %s23, 1
          %s402 = scalar_select %p401, %s23, 1
          %s403 = smul.addr %s402, 8
          %s404 = scalar_lea.vmem %s2, %s403
        $region56: #{tpu_custom_call.1} parent=43 // pred_fallthru
          _
        // Predicated region
        $region57: #{tpu_custom_call.1} parent=43 // pred_check
          %p405 = pneg %p121
        $region58: #{tpu_custom_call.1} parent=43 // pred_check_branch
          %407 = sbr.rel (%p405) target = $region60
        $region59: #{tpu_custom_call.1} parent=43 // pred_region
          %p408 = scmp.lt.s32.totalorder %s23, 1
          %s409 = scalar_select %p408, %s23, 1
          %s410 = smul.addr %s409, 8
          %s411 = scalar_lea.vmem %s3, %s410
        $region60: #{tpu_custom_call.1} parent=43 // pred_fallthru
          _
        // Predicated region
        $region61: #{tpu_custom_call.1} parent=43 // pred_check
          %p412 = pneg %p147
        $region62: #{tpu_custom_call.1} parent=43 // pred_check_branch
          %414 = sbr.rel (%p412) target = $region64
        $region63: #{tpu_custom_call.1} parent=43 // pred_region
          %p415 = scmp.lt.s32.totalorder %s23, 1
          %s416 = scalar_select %p415, %s23, 1
          %s417 = smul.addr %s416, 8
          %s418 = scalar_lea.vmem %s4, %s417
        $region64: #{tpu_custom_call.1} parent=43 // pred_fallthru
          _
      $region44: #{tpu_custom_call.1} parent=5 // pred_fallthru
        _
      %p419 = scmp.le.s32.totalorder 1, %s23
      %p420 = scmp.lt.s32.totalorder %s23, 3
      %p421 = pnand %p419, %p420
      %p422 = pneg %p421
      // Predicated region
      $region65: #{tpu_custom_call.1} parent=5 // pred_check
        _
      $region66: #{tpu_custom_call.1} parent=5 // pred_check_branch
        %424 = sbr.rel (%p421) target = $region68
      $region67: #{tpu_custom_call.1} parent=5 // pred_region
        %s425 = ssub.s32 %s23, 1
        // Predicated region
        $region69: #{tpu_custom_call.1} parent=67 // pred_check
          %p426 = pneg %p174
        $region70: #{tpu_custom_call.1} parent=67 // pred_check_branch
          %428 = sbr.rel (%p426) target = $region72
        $region71: #{tpu_custom_call.1} parent=67 // pred_region
          %429 = dma.done [#allocation3], 2048
        $region72: #{tpu_custom_call.1} parent=67 // pred_fallthru
          _
        // Predicated region
        $region73: #{tpu_custom_call.1} parent=67 // pred_check
          %p430 = pneg %p258
        $region74: #{tpu_custom_call.1} parent=67 // pred_check_branch
          %432 = sbr.rel (%p430) target = $region76
        $region75: #{tpu_custom_call.1} parent=67 // pred_region
          %433 = dma.done [#allocation5], 16
        $region76: #{tpu_custom_call.1} parent=67 // pred_fallthru
          _
        %434 = sfence
        %p435 = scmp.lt.s32.totalorder %s28, 1
        %s436 = scalar_select %p435, %s28, 1
        %s437 = smul.addr %s436, 4
        %s438 = scalar_lea.vmem %s0, %s437
        %p439 = pneg %p49
        %p440 = pneg %p46
        %p441 = scmp.lt.s32.totalorder %s28, 1
        %s442 = scalar_select %p441, %s28, 1
        %s443 = smul.addr %s442, 4
        %s444 = scalar_lea.vmem %s1, %s443
        %p445 = pneg %p75
        %p446 = pneg %p72
        %p447 = scmp.lt.s32.totalorder %s28, 1
        %s448 = scalar_select %p447, %s28, 1
        %s449 = smul.addr %s448, 8
        %s450 = scalar_lea.vmem %s2, %s449
        %p451 = pneg %p101
        %p452 = pneg %p98
        %p453 = scmp.lt.s32.totalorder %s28, 1
        %s454 = scalar_select %p453, %s28, 1
        %s455 = smul.addr %s454, 8
        %s456 = scalar_lea.vmem %s3, %s455
        %p457 = pneg %p127
        %p458 = pneg %p124
        %p459 = scmp.lt.s32.totalorder %s28, 1
        %s460 = scalar_select %p459, %s28, 1
        %s461 = smul.addr %s460, 8
        %s462 = scalar_lea.vmem %s4, %s461
        %p463 = pneg %p153
        %p464 = pneg %p150
        %p465 = pneg %p174
        %p466 = pneg %p171
        %p467 = pneg %p195
        %p468 = pneg %p192
        %p469 = pneg %p216
        %p470 = pneg %p213
        %p471 = pneg %p237
        %p472 = pneg %p234
        %p473 = pneg %p258
        %p474 = pneg %p255
        %p475 = pneg %p279
        %p476 = pneg %p276
        %p477 = pneg %p300
        %p478 = pneg %p297
        %p479 = pneg %p326
        %p480 = pneg %p323
        %s481 = sand.u32 %s313, 1
        %s482 = scalar_lea.sflag [#allocation4], %s481
        %s483 = sand.u32 %s313, 1
        %s484 = smul.addr %s483, 4
        %s485 = scalar_lea.vmem [#allocation7], %s484
        %p486 = scmp.lt.s32.totalorder %s28, 1
        %s487 = scalar_select %p486, %s28, 1
        %s488 = smul.addr %s487, 4
        %s489 = scalar_lea.vmem %s0, %s488
        %p490 = scmp.lt.s32.totalorder %s28, 1
        %s491 = scalar_select %p490, %s28, 1
        %s492 = smul.addr %s491, 4
        %s493 = scalar_lea.vmem %s1, %s492
        %p494 = scmp.lt.s32.totalorder %s28, 1
        %s495 = scalar_select %p494, %s28, 1
        %s496 = smul.addr %s495, 8
        %s497 = scalar_lea.vmem %s2, %s496
        %p498 = scmp.lt.s32.totalorder %s28, 1
        %s499 = scalar_select %p498, %s28, 1
        %s500 = smul.addr %s499, 8
        %s501 = scalar_lea.vmem %s3, %s500
        %p502 = scmp.lt.s32.totalorder %s28, 1
        %s503 = scalar_select %p502, %s28, 1
        %s504 = smul.addr %s503, 8
        %s505 = scalar_lea.vmem %s4, %s504
        %v507 = vld [vmem:[%s497] sm:$0xff]
        %v508 = vpack.c.bf16 %v507, %v507
        %v509 = vld [vmem:[%s489] sm:$0xf]
        %vm510 = vcmask 64512
        %v512 = vsel %vm510, %v509, 0
        %vm514 = vcmask 1043456
        %v516 = vsel %vm514, %v508, 0
        %518 = vmatprep.subr.bf16.mxu0 0
        %519 = vmatpush1.bf16.msra.mxu0 0
        %520 = vmatprep.subr.bf16.mxu0 0
        %521 = vmatpush1.bf16.msra.mxu0 0
        %522 = vmatprep.subr.bf16.mxu0 0
        %523 = vmatpush1.bf16.msra.mxu0 0
        %524 = vmatprep.subr.bf16.mxu0 0
        %525 = vmatpush1.bf16.msra.mxu0 0
        %526 = vmatprep.subr.bf16.mxu0 0
        %527 = vmatpush1.bf16.msra.mxu0 0
        %528 = vmatprep.subr.bf16.mxu0 0
        %529 = vmatpush1.bf16.msra.mxu0 0
        %530 = vmatprep.subr.bf16.mxu0 0
        %531 = vmatpush1.bf16.msra.mxu0 0
        %532 = vmatprep.subr.bf16.mxu0 0
        %533 = vmatpush1.bf16.msra.mxu0 %v516
        %534 = vmatprep.subr.bf16.mxu0 0
        %535 = vmatpush2.bf16.msra.mxu0 0
        %536 = vmatprep.subr.bf16.mxu0 0
        %537 = vmatpush2.bf16.msra.mxu0 0
        %538 = vmatprep.subr.bf16.mxu0 0
        %539 = vmatpush2.bf16.msra.mxu0 0
        %540 = vmatprep.subr.bf16.mxu0 0
        %541 = vmatpush2.bf16.msra.mxu0 0
        %542 = vmatprep.subr.bf16.mxu0 0
        %543 = vmatpush2.bf16.msra.mxu0 0
        %544 = vmatprep.subr.bf16.mxu0 0
        %545 = vmatpush2.bf16.msra.mxu0 0
        %546 = vmatprep.subr.bf16.mxu0 0
        %547 = vmatpush2.bf16.msra.mxu0 0
        %548 = vmatprep.subr.bf16.mxu0 0
        %549 = vmatpush2.bf16.msra.mxu0 0
        %550 = vmatprep.mubr.bf16.mxu0 0
        %551 = vmatmul.mubr.bf16.gmra.mxu0 %v512
        %v552 = vpop.f32.mrf.mxu0
        %v553 = vadd.f32 0.0, %v552
        %v554 = vpop.f32.mrf.mxu0
        %v555 = vpop.f32.mrf.mxu0
        %v556 = vpop.f32.mrf.mxu0
        %557 = vdwg.mxu0
        %v558 = vld [vmem:[%s493] sm:$0xf]
        %v560 = vsel %vm510, %v558, 0
        %562 = vmatprep.subr.bf16.mxu0 0
        %563 = vmatpush1.bf16.msra.mxu0 0
        %564 = vmatprep.subr.bf16.mxu0 0
        %565 = vmatpush1.bf16.msra.mxu0 0
        %566 = vmatprep.subr.bf16.mxu0 0
        %567 = vmatpush1.bf16.msra.mxu0 0
        %568 = vmatprep.subr.bf16.mxu0 0
        %569 = vmatpush1.bf16.msra.mxu0 0
        %570 = vmatprep.subr.bf16.mxu0 0
        %571 = vmatpush1.bf16.msra.mxu0 0
        %572 = vmatprep.subr.bf16.mxu0 0
        %573 = vmatpush1.bf16.msra.mxu0 0
        %574 = vmatprep.subr.bf16.mxu0 0
        %575 = vmatpush1.bf16.msra.mxu0 0
        %576 = vmatprep.subr.bf16.mxu0 0
        %577 = vmatpush1.bf16.msra.mxu0 %v516
        %578 = vmatprep.subr.bf16.mxu0 0
        %579 = vmatpush2.bf16.msra.mxu0 0
        %580 = vmatprep.subr.bf16.mxu0 0
        %581 = vmatpush2.bf16.msra.mxu0 0
        %582 = vmatprep.subr.bf16.mxu0 0
        %583 = vmatpush2.bf16.msra.mxu0 0
        %584 = vmatprep.subr.bf16.mxu0 0
        %585 = vmatpush2.bf16.msra.mxu0 0
        %586 = vmatprep.subr.bf16.mxu0 0
        %587 = vmatpush2.bf16.msra.mxu0 0
        %588 = vmatprep.subr.bf16.mxu0 0
        %589 = vmatpush2.bf16.msra.mxu0 0
        %590 = vmatprep.subr.bf16.mxu0 0
        %591 = vmatpush2.bf16.msra.mxu0 0
        %592 = vmatprep.subr.bf16.mxu0 0
        %593 = vmatpush2.bf16.msra.mxu0 0
        %594 = vmatprep.mubr.bf16.mxu0 0
        %595 = vmatmul.mubr.bf16.gmra.mxu0 %v560
        %v596 = vpop.f32.mrf.mxu0
        %v597 = vadd.f32 0.0, %v596
        %v598 = vpop.f32.mrf.mxu0
        %v599 = vpop.f32.mrf.mxu0
        %v600 = vpop.f32.mrf.mxu0
        %601 = vdwg.mxu0
        %v602 = vld [vmem:[%s7] sm:$0x1]
        %v604 = vlaneseq
        %v605 = vshrl.u32 %v604, 7
        %v606 = vsub.s32 0, %v605
        %v607 = vrot.slane %v602, %v606
        %v609 = vmul.f32 %v553, %v607
        %610 = vadd.xlane.f32.xlu0 %v609
        %v611 = vpop.xlane.xlu0 %610
        %v612 = vxor.u32 %v611, 2147483648
        %v613 = vmul.f32 %v612, 1.442695
        %v614 = vpow.pop %v613
        %v615 = vadd.f32 %v614, 1.0
        %v616 = vrcp.pop %v615
        %v617 = vmul.f32 1.0, %v616
        %v618 = vmul.f32 %v553, %v617
        %s619 = sld [smem:[#allocation6]]
        %v620 = vstv %s619
        %v621 = vadd.f32 %v618, %v620
        %v622 = vld [vmem:[%s8] sm:$0x1]
        %v624 = vlaneseq
        %v625 = vshrl.u32 %v624, 7
        %v626 = vsub.s32 0, %v625
        %v627 = vrot.slane %v622, %v626
        %v629 = vmul.f32 %v597, %v627
        %630 = vadd.xlane.f32.xlu0 %v629
        %v631 = vpop.xlane.xlu0 %630
        %v632 = vxor.u32 %v631, 2147483648
        %v633 = vmul.f32 %v632, 1.442695
        %v634 = vpow.pop %v633
        %v635 = vadd.f32 %v634, 1.0
        %v636 = vrcp.pop %v635
        %v637 = vmul.f32 1.0, %v636
        %v638 = vmul.f32 %v597, %v637
        %s639 = sld [smem:[#allocation6 + $0x1]]
        %v640 = vstv %s639
        %v641 = vadd.f32 %v638, %v640
        %v642 = vadd.f32 %v621, %v507
        %v643 = vpack.c.bf16 %v642, %v642
        %v644 = vadd.f32 %v641, %v507
        %v645 = vpack.c.bf16 %v644, %v644
        %v646 = vld [vmem:[#allocation2] sm:$0xf]
        %v647 = vld [vmem:[#allocation2 + $0x4] sm:$0xf]
        %v648 = vld [vmem:[#allocation2 + $0x8] sm:$0xf]
        %v649 = vld [vmem:[#allocation2 + $0xc] sm:$0xf]
        %v650 = vld [vmem:[#allocation2 + $0x10] sm:$0xf]
        %v651 = vld [vmem:[#allocation2 + $0x14] sm:$0xf]
        %v652 = vld [vmem:[#allocation2 + $0x18] sm:$0xf]
        %v653 = vld [vmem:[#allocation2 + $0x1c] sm:$0xf]
        %v654 = vld [vmem:[#allocation2 + $0x20] sm:$0xf]
        %v655 = vld [vmem:[#allocation2 + $0x24] sm:$0xf]
        %v656 = vld [vmem:[#allocation2 + $0x28] sm:$0xf]
        %v657 = vld [vmem:[#allocation2 + $0x2c] sm:$0xf]
        %v658 = vld [vmem:[#allocation2 + $0x30] sm:$0xf]
        %v659 = vld [vmem:[#allocation2 + $0x34] sm:$0xf]
        %v660 = vld [vmem:[#allocation2 + $0x38] sm:$0xf]
        %v661 = vld [vmem:[#allocation2 + $0x3c] sm:$0xf]
        %v662 = vld [vmem:[#allocation2 + $0x40] sm:$0xf]
        %v663 = vld [vmem:[#allocation2 + $0x44] sm:$0xf]
        %v664 = vld [vmem:[#allocation2 + $0x48] sm:$0xf]
        %v665 = vld [vmem:[#allocation2 + $0x4c] sm:$0xf]
        %v666 = vld [vmem:[#allocation2 + $0x50] sm:$0xf]
        %v667 = vld [vmem:[#allocation2 + $0x54] sm:$0xf]
        %v668 = vld [vmem:[#allocation2 + $0x58] sm:$0xf]
        %v669 = vld [vmem:[#allocation2 + $0x5c] sm:$0xf]
        %v670 = vld [vmem:[#allocation2 + $0x60] sm:$0xf]
        %v671 = vld [vmem:[#allocation2 + $0x64] sm:$0xf]
        %v672 = vld [vmem:[#allocation2 + $0x68] sm:$0xf]
        %v673 = vld [vmem:[#allocation2 + $0x6c] sm:$0xf]
        %v674 = vld [vmem:[#allocation2 + $0x70] sm:$0xf]
        %v675 = vld [vmem:[#allocation2 + $0x74] sm:$0xf]
        %v676 = vld [vmem:[#allocation2 + $0x78] sm:$0xf]
        %v677 = vld [vmem:[#allocation2 + $0x7c] sm:$0xf]
        %v678 = vld [vmem:[%s6] sm:$0x1]
        %v680 = vlaneseq
        %v681 = vshrl.u32 %v680, 7
        %v682 = vsub.s32 0, %v681
        %v683 = vrot.slane %v678, %v682
        %v717 = vunpack.c.l.b16 %v646
        %v718 = vunpack.c.l.b16 %v647
        %v719 = vunpack.c.l.b16 %v648
        %v720 = vunpack.c.l.b16 %v649
        %v721 = vunpack.c.l.b16 %v650
        %v722 = vunpack.c.l.b16 %v651
        %v723 = vunpack.c.l.b16 %v652
        %v724 = vunpack.c.l.b16 %v653
        %v725 = vunpack.c.l.b16 %v654
        %v726 = vunpack.c.l.b16 %v655
        %v727 = vunpack.c.l.b16 %v656
        %v728 = vunpack.c.l.b16 %v657
        %v729 = vunpack.c.l.b16 %v658
        %v730 = vunpack.c.l.b16 %v659
        %v731 = vunpack.c.l.b16 %v660
        %v732 = vunpack.c.l.b16 %v661
        %v733 = vunpack.c.l.b16 %v662
        %v734 = vunpack.c.l.b16 %v663
        %v735 = vunpack.c.l.b16 %v664
        %v736 = vunpack.c.l.b16 %v665
        %v737 = vunpack.c.l.b16 %v666
        %v738 = vunpack.c.l.b16 %v667
        %v739 = vunpack.c.l.b16 %v668
        %v740 = vunpack.c.l.b16 %v669
        %v741 = vunpack.c.l.b16 %v670
        %v742 = vunpack.c.l.b16 %v671
        %v743 = vunpack.c.l.b16 %v672
        %v744 = vunpack.c.l.b16 %v673
        %v745 = vunpack.c.l.b16 %v674
        %v746 = vunpack.c.l.b16 %v675
        %v747 = vunpack.c.l.b16 %v676
        %v748 = vunpack.c.l.b16 %v677
        %v749 = vpack.c.b16 %v718, %v717
        %v750 = vpack.c.b16 %v720, %v719
        %v751 = vpack.c.b16 %v722, %v721
        %v752 = vpack.c.b16 %v724, %v723
        %v753 = vpack.c.b16 %v726, %v725
        %v754 = vpack.c.b16 %v728, %v727
        %v755 = vpack.c.b16 %v730, %v729
        %v756 = vpack.c.b16 %v732, %v731
        %v757 = vpack.c.b16 %v734, %v733
        %v758 = vpack.c.b16 %v736, %v735
        %v759 = vpack.c.b16 %v738, %v737
        %v760 = vpack.c.b16 %v740, %v739
        %v761 = vpack.c.b16 %v742, %v741
        %v762 = vpack.c.b16 %v744, %v743
        %v763 = vpack.c.b16 %v746, %v745
        %v764 = vpack.c.b16 %v748, %v747
        %781 = vmatprep.subr.bf16.mxu0 0
        %782 = vmatpush1.bf16.msra.mxu0 %v756
        %783 = vmatprep.subr.bf16.mxu0 0
        %784 = vmatpush1.bf16.msra.mxu0 %v755
        %785 = vmatprep.subr.bf16.mxu0 0
        %786 = vmatpush1.bf16.msra.mxu0 %v754
        %787 = vmatprep.subr.bf16.mxu0 0
        %788 = vmatpush1.bf16.msra.mxu0 %v753
        %789 = vmatprep.subr.bf16.mxu0 0
        %790 = vmatpush1.bf16.msra.mxu0 %v752
        %791 = vmatprep.subr.bf16.mxu0 0
        %792 = vmatpush1.bf16.msra.mxu0 %v751
        %793 = vmatprep.subr.bf16.mxu0 0
        %794 = vmatpush1.bf16.msra.mxu0 %v750
        %795 = vmatprep.subr.bf16.mxu0 0
        %796 = vmatpush1.bf16.msra.mxu0 %v749
        %797 = vmatprep.subr.bf16.mxu0 0
        %798 = vmatpush2.bf16.msra.mxu0 %v764
        %799 = vmatprep.subr.bf16.mxu0 0
        %800 = vmatpush2.bf16.msra.mxu0 %v763
        %801 = vmatprep.subr.bf16.mxu0 0
        %802 = vmatpush2.bf16.msra.mxu0 %v762
        %803 = vmatprep.subr.bf16.mxu0 0
        %804 = vmatpush2.bf16.msra.mxu0 %v761
        %805 = vmatprep.subr.bf16.mxu0 0
        %806 = vmatpush2.bf16.msra.mxu0 %v760
        %807 = vmatprep.subr.bf16.mxu0 0
        %808 = vmatpush2.bf16.msra.mxu0 %v759
        %809 = vmatprep.subr.bf16.mxu0 0
        %810 = vmatpush2.bf16.msra.mxu0 %v758
        %811 = vmatprep.subr.bf16.mxu0 0
        %812 = vmatpush2.bf16.msra.mxu0 %v757
        %813 = vmatprep.mubr.bf16.mxu0 %v645
        %814 = vmatmul.mubr.bf16.gmra.mxu0 %v643
        %v815 = vpop.f32.mrf.mxu0
        %v816 = vadd.f32 %v683, %v815
        %v817 = vpop.f32.mrf.mxu0
        %v818 = vpop.f32.mrf.mxu0
        %v819 = vpop.f32.mrf.mxu0
        %820 = vdwg.mxu0
        %v821 = vlaneseq
        %v822 = vand.u32 %v821, 127
        %vm823 = vcmp.lt.s32.totalorder %v822, 64
        %v824 = vld [vmem:[%s501] sm:$0xff]
        %v825 = vld [vmem:[%s505] sm:$0xff]
        %827 = vset.pattern.permute.xlu0 0
        %828 = vperm.xlu0 %827, %v824
        %v829 = vpop.permute.xlu0 %828
        %832 = vset.pattern.permute.xlu0 0
        %833 = vperm.xlu0 %832, %v825
        %v834 = vpop.permute.xlu0 %833
        %v836 = vsel %vm823, %v829, %v834
        %v837 = vmul.f32 %v816, %v836
        %838 = vadd.xlane.f32.xlu0 %v837
        %v839 = vpop.xlane.xlu0 %838
        %v840 = vmul.f32 %v839, 0.0078125
        %v841 = vsub.f32 %v837, %v840
        %v842 = vmul.f32 %v841, %v841
        %843 = vadd.xlane.f32.xlu0 %v842
        %v844 = vpop.xlane.xlu0 %843
        %v845 = vmul.f32 %v844, 0.0078125
        %v846 = vadd.f32 %v845, 1e-05
        %v847 = vrsqrt.pop %v846
        %v848 = vmul.f32 %v841, %v847
        %v849 = vld [vmem:[%s10] sm:$0x1]
        %v851 = vlaneseq
        %v852 = vshrl.u32 %v851, 7
        %v853 = vsub.s32 0, %v852
        %v854 = vrot.slane %v849, %v853
        %v856 = vmul.f32 %v848, %v854
        %v857 = vld [vmem:[%s11] sm:$0x1]
        %v859 = vlaneseq
        %v860 = vshrl.u32 %v859, 7
        %v861 = vsub.s32 0, %v860
        %v862 = vrot.slane %v857, %v861
        %v864 = vadd.f32 %v856, %v862
        %v865 = vmul.f32 %v864, 0.5
        %v866 = vmul.f32 %v864, 0.044715
        %v867 = vmul.f32 %v866, %v864
        %v868 = vmul.f32 %v867, %v864
        %v869 = vadd.f32 %v864, %v868
        %v870 = vmul.f32 %v869, 0.7978846
        %v871 = vtanh.pop %v870
        %v872 = vadd.f32 %v871, 1.0
        %v873 = vmul.f32 %v865, %v872
        %v874 = vpack.c.bf16 %v873, %v873
        %875 = vst [vmem:[%s485] sm:$0xf] %v874
        %s876 = sand.u32 %s313, 1
        %s877 = scalar_lea.sflag [#allocation4], %s876
        %s878 = sand.u32 %s313, 1
        %s879 = smul.addr %s878, 4
        %s880 = scalar_lea.vmem [#allocation7], %s879
        // Predicated region
        $region77: #{tpu_custom_call.1} parent=67 // pred_check
          %p881 = pneg %p323
        $region78: #{tpu_custom_call.1} parent=67 // pred_check_branch
          %883 = sbr.rel (%p881) target = $region80
        $region79: #{tpu_custom_call.1} parent=67 // pred_region
          %s885 = ssub.s32 64, 64
          %886 = vsyncadd %s877, %s885
          %s887 = smul.addr %s28, 64
          %s888 = scalar_lea.hbm %s12, %s887
          %s890 = sshll.u32 %s880, 4
          %s891 = int_to_ptr.vmem [resolvable:$true] %s890
          %893 = dma.vmem_to_hbm [thread:$0]  %s891, 64, %s888, %s877
        $region80: #{tpu_custom_call.1} parent=67 // pred_fallthru
          _
      $region68: #{tpu_custom_call.1} parent=5 // pred_fallthru
        _
      %p894 = scmp.le.s32.totalorder 2, %s23
      // Predicated region
      $region81: #{tpu_custom_call.1} parent=5 // pred_check
        %p895 = pneg %p894
      $region82: #{tpu_custom_call.1} parent=5 // pred_check_branch
        %897 = sbr.rel (%p895) target = $region84
      $region83: #{tpu_custom_call.1} parent=5 // pred_region
        %s898 = ssub.s32 %s23, 2
        // Predicated region
        $region85: #{tpu_custom_call.1} parent=83 // pred_check
          %p899 = pneg %p329
        $region86: #{tpu_custom_call.1} parent=83 // pred_check_branch
          %901 = sbr.rel (%p899) target = $region88
        $region87: #{tpu_custom_call.1} parent=83 // pred_region
          %s902 = sand.u32 %s314, 1
          %s903 = scalar_lea.sflag [#allocation4], %s902
          %s904 = sand.u32 %s314, 1
          %s905 = smul.addr %s904, 4
          %s906 = scalar_lea.vmem [#allocation7], %s905
          %907 = dma.done %s903, 64
        $region88: #{tpu_custom_call.1} parent=83 // pred_fallthru
          _
      $region84: #{tpu_custom_call.1} parent=5 // pred_fallthru
        _
    $region6: #{tpu_custom_call.1} parent=1 // loop_footer
      %s27 = sadd.s32 1, %s23
    $region7: #{tpu_custom_call.1} parent=1 // loop_footer_branch
      %22 = sbr.rel target = $region3
    $region8: #{tpu_custom_call.1} parent=1 // loop_exit
      _
    %908 = vsyncpa [#allocation3], 1
    %s909 = scalar_lea.sflag [#allocation3], 1
    %910 = vsyncpa %s909, 1
    %911 = vsyncpa [#allocation4], 1
    %s912 = scalar_lea.sflag [#allocation4], 1
    %913 = vsyncpa %s912, 1
    %914 = vsyncpa [#allocation5], 1
    %s915 = scalar_lea.sflag [#allocation5], 1
    %916 = vsyncpa %s915, 1

</llo_original>
